<compile_context>
chip_gen: v7x
topology: tpu7x:2x2x1
jax: 0.10.0
libtpu: 0.0.40
codegen_flags: <defaults>
</compile_context>

<pallas_src>
import functools

import jax
import jax.numpy as jnp
from jax.experimental import pallas as pl
from jax.experimental.pallas import tpu as pltpu

H = 100        # hidden width fixed by PNet.__init__
LANE = 128     # TPU lane width
SUBLANE = 8    # f32 sublane height


def _round_up(n, m):
    return ((n + m - 1) // m) * m


# ----------------------------------------------------------------------------
# Fused kernel: one program, three matmuls, everything resident in VMEM.
# ----------------------------------------------------------------------------
def pnet_kernel(x_ref, w1_ref, b1_ref, wz_ref, bz_ref, wo_ref, bo_ref, out_ref):
    # trunk: h = tanh(x @ W1 + b1)                            (Bp, 128)
    h = jnp.tanh(jnp.dot(x_ref[...], w1_ref[...],
                         preferred_element_type=jnp.float32) + b1_ref[...])
    # all heads, layer 1 (global head + ncomp component heads concatenated
    # along the output columns): z = tanh(h @ Wz + bz)        (Bp, (ncomp+1)*128)
    z = jnp.tanh(jnp.dot(h, wz_ref[...],
                         preferred_element_type=jnp.float32) + bz_ref[...])
    # all heads, layer 2 (block-structured weight -> one lane-dense output slab)
    out_ref[...] = (jnp.dot(z, wo_ref[...],
                            preferred_element_type=jnp.float32)
                    + bo_ref[...]).astype(out_ref.dtype)


# ----------------------------------------------------------------------------
# One-time packing of the logical PNet parameters into padded / fused slabs.
# ----------------------------------------------------------------------------
def pack_params(params, ncomp, nacomp, naglobal):
    (w1, b1, wh1, bh1, wh2, bh2, wg1, bg1, wg2, bg2) = params
    d_in = w1.shape[0]
    d_in_p = _round_up(d_in, LANE)
    h_p = _round_up(H, LANE)                      # 128
    nh = ncomp + 1                                # global head + component heads
    out_cols = naglobal + ncomp * nacomp
    out_p = max(LANE, _round_up(out_cols, LANE))  # lane-dense output width

    # fc1: (d_in_p, 128)
    w1p = jnp.zeros((d_in_p, h_p), jnp.float32).at[:d_in, :H].set(w1)
    b1p = jnp.zeros((1, h_p), jnp.float32).at[:, :H].set(b1)

    # layer 1 of every head, concatenated along output columns.
    # head 0 = global head, heads 1..ncomp = component heads.
    wzp = jnp.zeros((h_p, nh * h_p), jnp.float32)
    bzp = jnp.zeros((1, nh * h_p), jnp.float32)
    wzp = wzp.at[:H, 0:H].set(wg1)
    bzp = bzp.at[:, 0:H].set(bg1)
    for i in range(ncomp):
        c0 = (i + 1) * h_p
        wzp = wzp.at[:H, c0:c0 + H].set(wh1[i])
        bzp = bzp.at[:, c0:c0 + H].set(bh1[i])

    # layer 2 of every head as one block-structured matrix: rows of head i live
    # in [i*128, i*128+100), its output columns are packed contiguously into a
    # single lane-dense slab [global | comp_0 | ... | comp_{ncomp-1}].
    wop = jnp.zeros((nh * h_p, out_p), jnp.float32)
    bop = jnp.zeros((1, out_p), jnp.float32)
    wop = wop.at[0:H, 0:naglobal].set(wg2)
    bop = bop.at[:, 0:naglobal].set(bg2)
    for i in range(ncomp):
        r0 = (i + 1) * h_p
        c0 = naglobal + i * nacomp
        wop = wop.at[r0:r0 + H, c0:c0 + nacomp].set(wh2[i])
        bop = bop.at[:, c0:c0 + nacomp].set(bh2[i])

    return (w1p, b1p, wzp, bzp, wop, bop)


# ----------------------------------------------------------------------------
# Forward wrapper: pad batch, run the fused kernel once, slice valid outputs.
# ----------------------------------------------------------------------------
@functools.partial(jax.jit, static_argnames=("ncomp", "nacomp", "naglobal"))
def pnet_forward(x, packed, *, ncomp, nacomp, naglobal):
    (w1p, b1p, wzp, bzp, wop, bop) = packed
    B, d_in = x.shape
    d_in_p = w1p.shape[0]
    out_p = wop.shape[1]
    b_p = max(SUBLANE, _round_up(B, SUBLANE))

    xp = jnp.zeros((b_p, d_in_p), jnp.float32).at[:B, :d_in].set(x)

    vmem = lambda: pl.BlockSpec(memory_space=pltpu.MemorySpace.VMEM)
    out = pl.pallas_call(
        pnet_kernel,
        in_specs=[vmem() for _ in range(7)],
        out_specs=vmem(),
        out_shape=jax.ShapeDtypeStruct((b_p, out_p), jnp.float32),
    )(xp, w1p, b1p, wzp, bzp, wop, bop)

    out_global = out[:B, :naglobal]
    out_comp = (out[:B, naglobal:naglobal + ncomp * nacomp]
                .reshape(B, ncomp, nacomp)
                .transpose(1, 0, 2))
    return out_comp, out_global


# ----------------------------------------------------------------------------
# Logical (unpacked) parameter init, matching PyTorch nn.Linear defaults, plus
# a pure-JAX reference of the original forward for correctness checking.
# ----------------------------------------------------------------------------
def init_params(key, ncomp, nstcomp, nacomp, naglobal,
                objectives=1, use_accrued_reward=False):
    input_dim = ncomp * nstcomp + 1
    reward_size = objectives if use_accrued_reward else 0
    d_in = input_dim + reward_size
    keys = jax.random.split(key, 5)

    def lin(k, fan_in, fan_out):
        kw, kb = jax.random.split(k)
        bound = 1.0 / float(fan_in) ** 0.5
        w = jax.random.uniform(kw, (fan_in, fan_out), jnp.float32, -bound, bound)
        b = jax.random.uniform(kb, (1, fan_out), jnp.float32, -bound, bound)
        return w, b

    w1, b1 = lin(keys[0], d_in, H)

    wh1, bh1, wh2, bh2 = [], [], [], []
    for i in range(ncomp):
        wa, ba = lin(jax.random.fold_in(keys[1], i), H, H)
        wb, bb = lin(jax.random.fold_in(keys[2], i), H, nacomp)
        wh1.append(wa); bh1.append(ba); wh2.append(wb); bh2.append(bb)
    wh1 = jnp.stack(wh1)            # (ncomp, H, H)
    bh1 = jnp.stack(bh1)            # (ncomp, 1, H)
    wh2 = jnp.stack(wh2)            # (ncomp, H, nacomp)
    bh2 = jnp.stack(bh2)            # (ncomp, 1, nacomp)

    wg1, bg1 = lin(keys[3], H, H)
    wg2, bg2 = lin(keys[4], H, naglobal)
    return (w1, b1, wh1, bh1, wh2, bh2, wg1, bg1, wg2, bg2)


def pnet_ref(x, params):
    (w1, b1, wh1, bh1, wh2, bh2, wg1, bg1, wg2, bg2) = params
    h = jnp.tanh(x @ w1 + b1)
    out_comp = jnp.stack([
        jnp.tanh(h @ wh1[i] + bh1[i][0]) @ wh2[i] + bh2[i][0]
        for i in range(wh1.shape[0])
    ])
    out_global = jnp.tanh(h @ wg1 + bg1) @ wg2 + bg2
    return out_comp, out_global


if __name__ == "__main__":
    ncomp, nstcomp, nacomp, naglobal = 4, 3, 3, 2
    batch = 2
    input_dim = ncomp * nstcomp + 1          # 13 (use_accrued_reward=False)

    key = jax.random.PRNGKey(0)
    kx, kp = jax.random.split(key)
    x = jax.random.normal(kx, (batch, input_dim), jnp.float32)
    params = init_params(kp, ncomp, nstcomp, nacomp, naglobal)
    packed = jax.block_until_ready(pack_params(params, ncomp, nacomp, naglobal))

    out_comp, out_global = jax.block_until_ready(
        pnet_forward(x, packed, ncomp=ncomp, nacomp=nacomp, naglobal=naglobal))
    ref_comp, ref_global = pnet_ref(x, params)

    assert out_comp.shape == (ncomp, batch, nacomp)
    assert out_global.shape == (batch, naglobal)
    assert jnp.allclose(out_comp, ref_comp, atol=1e-5, rtol=1e-5)
    assert jnp.allclose(out_global, ref_global, atol=1e-5, rtol=1e-5)
    print("KERNEL_OK")
</pallas_src>

<mosaic_0001>
module attributes {stable_mosaic.version = 11 : i64} {
  func.func @pnet_kernel(%arg0: memref<8x128xf32, #tpu.memory_space<vmem>>, %arg1: memref<128x128xf32, #tpu.memory_space<vmem>>, %arg2: memref<1x128xf32, #tpu.memory_space<vmem>>, %arg3: memref<128x640xf32, #tpu.memory_space<vmem>>, %arg4: memref<1x640xf32, #tpu.memory_space<vmem>>, %arg5: memref<640x128xf32, #tpu.memory_space<vmem>>, %arg6: memref<1x128xf32, #tpu.memory_space<vmem>>, %arg7: memref<8x128xf32, #tpu.memory_space<vmem>>) attributes {dimension_semantics = [], scalar_prefetch = 0 : i64, scratch_operands = 0 : i64, tpu.core_type = #tpu.core_type<tc>} {
    %c0 = arith.constant 0 : index
    %c0_0 = arith.constant 0 : index
    %0 = vector.load %arg0[%c0, %c0_0] : memref<8x128xf32, #tpu.memory_space<vmem>>, vector<8x128xf32>
    %c0_1 = arith.constant 0 : index
    %c0_2 = arith.constant 0 : index
    %1 = vector.load %arg1[%c0_1, %c0_2] : memref<128x128xf32, #tpu.memory_space<vmem>>, vector<128x128xf32>
    %cst = arith.constant dense<0.000000e+00> : vector<8x128xf32>
    %2 = tpu.matmul %0, %1, %cst {dimension_numbers = #tpu.dot_dimension_numbers<[1], [0], [0], [1], [0, 0, 1, 1], [], []>} : vector<8x128xf32>, vector<128x128xf32>, vector<8x128xf32> -> vector<8x128xf32>
    %c0_3 = arith.constant 0 : index
    %c0_4 = arith.constant 0 : index
    %3 = vector.load %arg2[%c0_3, %c0_4] : memref<1x128xf32, #tpu.memory_space<vmem>>, vector<1x128xf32>
    %4 = vector.broadcast %3 : vector<1x128xf32> to vector<8x128xf32>
    %5 = arith.addf %2, %4 : vector<8x128xf32>
    %6 = math.tanh %5 : vector<8x128xf32>
    %c0_5 = arith.constant 0 : index
    %c0_6 = arith.constant 0 : index
    %7 = vector.load %arg3[%c0_5, %c0_6] : memref<128x640xf32, #tpu.memory_space<vmem>>, vector<128x640xf32>
    %cst_7 = arith.constant dense<0.000000e+00> : vector<8x640xf32>
    %8 = tpu.matmul %6, %7, %cst_7 {dimension_numbers = #tpu.dot_dimension_numbers<[1], [0], [0], [1], [0, 0, 1, 1], [], []>} : vector<8x128xf32>, vector<128x640xf32>, vector<8x640xf32> -> vector<8x640xf32>
    %c0_8 = arith.constant 0 : index
    %c0_9 = arith.constant 0 : index
    %9 = vector.load %arg4[%c0_8, %c0_9] : memref<1x640xf32, #tpu.memory_space<vmem>>, vector<1x640xf32>
    %10 = vector.broadcast %9 : vector<1x640xf32> to vector<8x640xf32>
    %11 = arith.addf %8, %10 : vector<8x640xf32>
    %12 = math.tanh %11 : vector<8x640xf32>
    %c0_10 = arith.constant 0 : index
    %c0_11 = arith.constant 0 : index
    %13 = vector.load %arg5[%c0_10, %c0_11] : memref<640x128xf32, #tpu.memory_space<vmem>>, vector<640x128xf32>
    %cst_12 = arith.constant dense<0.000000e+00> : vector<8x128xf32>
    %14 = tpu.matmul %12, %13, %cst_12 {dimension_numbers = #tpu.dot_dimension_numbers<[1], [0], [0], [1], [0, 0, 1, 1], [], []>} : vector<8x640xf32>, vector<640x128xf32>, vector<8x128xf32> -> vector<8x128xf32>
    %c0_13 = arith.constant 0 : index
    %c0_14 = arith.constant 0 : index
    %15 = vector.load %arg6[%c0_13, %c0_14] : memref<1x128xf32, #tpu.memory_space<vmem>>, vector<1x128xf32>
    %16 = vector.broadcast %15 : vector<1x128xf32> to vector<8x128xf32>
    %17 = arith.addf %14, %16 : vector<8x128xf32>
    %c0_15 = arith.constant 0 : index
    %c0_16 = arith.constant 0 : index
    %18 = vector.load %arg7[%c0_15, %c0_16] : memref<8x128xf32, #tpu.memory_space<vmem>>, vector<8x128xf32>
    tpu.vector_store %arg7[%c0_15, %c0_16], %17 {strides = array<i32>} : memref<8x128xf32, #tpu.memory_space<vmem>>, vector<8x128xf32>,
    return
  }
}

</mosaic_0001>

<llo_original>
// kernel: pnet_forward.1
$region0: #{pnet_forward.1}
  #allocation0 [shape = 'u32[]', space=smem, size = 0x4, offset = 0x4, fixed_abs, tag = 'smem constant byte address 0x4 - core index']
  #allocation1 [shape = 'u32[144,128]{1,0:T(1,128)}', space=vmem, size = 0x12000, scoped, tag = 'internal scratch']
  %s0 = inlined_call_operand.vmem [shape: f32[8,128], index: 0, kind: input, shape index: {}]
  %s1 = inlined_call_operand.hbm [shape: f32[128,128], index: 1, kind: input, shape index: {}]
  %s2 = inlined_call_operand.vmem [shape: f32[1,128], index: 2, kind: input, shape index: {}]
  %s3 = inlined_call_operand.hbm [shape: f32[128,640], index: 3, kind: input, shape index: {}]
  %s4 = inlined_call_operand.vmem [shape: f32[1,640], index: 4, kind: input, shape index: {}]
  %s5 = inlined_call_operand.hbm [shape: f32[640,128], index: 5, kind: input, shape index: {}]
  %s6 = inlined_call_operand.vmem [shape: f32[1,128], index: 6, kind: input, shape index: {}]
  %s7 = inlined_call_operand.vmem [shape: f32[8,128], index: 7, kind: output, shape index: {}]
  %s8 = sld [smem:[#allocation0]]
  $region50: #{pnet_forward.1} parent=0
    _
  %s10 = ssub.s32 1, %s8
  %s11 = scalar_select 0, %s10, %s8
  $region1: #{pnet_forward.1} parent=0
    #allocation2 [shape = 'u8[65536]{0}', space=vmem, size = 0x10000, scoped, tag = 'input window, operand 1, single buffered']
    #allocation3 [shape = 's32[1]{0}', space=sflag, size = 0x4, scoped, tag = 'scoped memory for pnet_forward.1']
    #allocation4 [shape = 'u8[327680]{0}', space=vmem, size = 0x50000, scoped, tag = 'input window, operand 3, single buffered']
    #allocation5 [shape = 's32[1]{0}', space=sflag, size = 0x4, scoped, tag = 'scoped memory for pnet_forward.1']
    #allocation6 [shape = 'u8[327680]{0}', space=vmem, size = 0x50000, scoped, tag = 'input window, operand 5, single buffered']
    %12 = vsyncpa [#allocation3], 0
    %13 = vsyncpa [#allocation5], 0
    // Predicated region
    $region2: #{pnet_forward.1} parent=1 // pred_check
      _
    $region3: #{pnet_forward.1} parent=1 // pred_check_branch
      %15 = sbr.rel (0) target = $region5
    $region4: #{pnet_forward.1} parent=1 // pred_region
      _
    $region5: #{pnet_forward.1} parent=1 // pred_fallthru
      _
    // Predicated region
    $region6: #{pnet_forward.1} parent=1 // pred_check
      _
    $region7: #{pnet_forward.1} parent=1 // pred_check_branch
      %17 = sbr.rel (0) target = $region9
    $region8: #{pnet_forward.1} parent=1 // pred_region
      %s19 = ssub.s32 2048, 2048
      %20 = vsyncadd [#allocation3], %s19
      %s21 = sshll.u32 [#allocation2], 4
      %s22 = int_to_ptr.vmem [resolvable:$true] %s21
      %27 = dma.hbm_to_vmem [thread:$0]  %s1, 2048, %s22, [#allocation3], 128, 128, 8
    $region9: #{pnet_forward.1} parent=1 // pred_fallthru
      _
    // Predicated region
    $region10: #{pnet_forward.1} parent=1 // pred_check
      _
    $region11: #{pnet_forward.1} parent=1 // pred_check_branch
      %29 = sbr.rel (0) target = $region13
    $region12: #{pnet_forward.1} parent=1 // pred_region
      _
    $region13: #{pnet_forward.1} parent=1 // pred_fallthru
      _
    // Predicated region
    $region14: #{pnet_forward.1} parent=1 // pred_check
      _
    $region15: #{pnet_forward.1} parent=1 // pred_check_branch
      %31 = sbr.rel (0) target = $region17
    $region16: #{pnet_forward.1} parent=1 // pred_region
      %s33 = ssub.s32 10240, 10240
      %34 = vsyncadd [#allocation5], %s33
      %s35 = sshll.u32 [#allocation4], 4
      %s36 = int_to_ptr.vmem [resolvable:$true] %s35
      %41 = dma.hbm_to_vmem [thread:$0]  %s3, 10240, %s36, [#allocation5], 640, 640, 40
    $region17: #{pnet_forward.1} parent=1 // pred_fallthru
      _
    // Predicated region
    $region18: #{pnet_forward.1} parent=1 // pred_check
      _
    $region19: #{pnet_forward.1} parent=1 // pred_check_branch
      %43 = sbr.rel (0) target = $region21
    $region20: #{pnet_forward.1} parent=1 // pred_region
      _
    $region21: #{pnet_forward.1} parent=1 // pred_fallthru
      _
    // Predicated region
    $region22: #{pnet_forward.1} parent=1 // pred_check
      _
    $region23: #{pnet_forward.1} parent=1 // pred_check_branch
      %45 = sbr.rel (0) target = $region25
    $region24: #{pnet_forward.1} parent=1 // pred_region
      %s47 = ssub.s32 10240, 10240
      %48 = vsyncadd [#allocation5], %s47
      %s49 = sshll.u32 [#allocation6], 4
      %s50 = int_to_ptr.vmem [resolvable:$true] %s49
      %55 = dma.hbm_to_vmem [thread:$0]  %s5, 10240, %s50, [#allocation5], 128, 128, 8
    $region25: #{pnet_forward.1} parent=1 // pred_fallthru
      _
    // Predicated region
    $region26: #{pnet_forward.1} parent=1 // pred_check
      _
    $region27: #{pnet_forward.1} parent=1 // pred_check_branch
      %57 = sbr.rel (0) target = $region29
    $region28: #{pnet_forward.1} parent=1 // pred_region
      _
    $region29: #{pnet_forward.1} parent=1 // pred_fallthru
      _
    // Predicated region
    $region30: #{pnet_forward.1} parent=1 // pred_check
      _
    $region31: #{pnet_forward.1} parent=1 // pred_check_branch
      %59 = sbr.rel (0) target = $region33
    $region32: #{pnet_forward.1} parent=1 // pred_region
      %60 = dma.done [#allocation3], 2048
    $region33: #{pnet_forward.1} parent=1 // pred_fallthru
      _
    // Predicated region
    $region34: #{pnet_forward.1} parent=1 // pred_check
      _
    $region35: #{pnet_forward.1} parent=1 // pred_check_branch
      %62 = sbr.rel (0) target = $region37
    $region36: #{pnet_forward.1} parent=1 // pred_region
      %63 = dma.done [#allocation5], 10240
    $region37: #{pnet_forward.1} parent=1 // pred_fallthru
      _
    // Predicated region
    $region38: #{pnet_forward.1} parent=1 // pred_check
      _
    $region39: #{pnet_forward.1} parent=1 // pred_check_branch
      %65 = sbr.rel (0) target = $region41
    $region40: #{pnet_forward.1} parent=1 // pred_region
      %66 = dma.done [#allocation5], 10240
    $region41: #{pnet_forward.1} parent=1 // pred_fallthru
      _
    %v67 = vld [vmem:[%s0] sm:$0xff]
    %v68 = vld [vmem:[#allocation2] sm:$0xff]
    %v69 = vld [vmem:[#allocation2 + $0x8] sm:$0xff]
    %v70 = vld [vmem:[#allocation2 + $0x10] sm:$0xff]
    %v71 = vld [vmem:[#allocation2 + $0x18] sm:$0xff]
    %v72 = vld [vmem:[#allocation2 + $0x20] sm:$0xff]
    %v73 = vld [vmem:[#allocation2 + $0x28] sm:$0xff]
    %v74 = vld [vmem:[#allocation2 + $0x30] sm:$0xff]
    %v75 = vld [vmem:[#allocation2 + $0x38] sm:$0xff]
    %v76 = vld [vmem:[#allocation2 + $0x40] sm:$0xff]
    %v77 = vld [vmem:[#allocation2 + $0x48] sm:$0xff]
    %v78 = vld [vmem:[#allocation2 + $0x50] sm:$0xff]
    %v79 = vld [vmem:[#allocation2 + $0x58] sm:$0xff]
    %v80 = vld [vmem:[#allocation2 + $0x60] sm:$0xff]
    %v81 = vld [vmem:[#allocation2 + $0x68] sm:$0xff]
    %v82 = vld [vmem:[#allocation2 + $0x70] sm:$0xff]
    %v83 = vld [vmem:[#allocation2 + $0x78] sm:$0xff]
    %v84 = vld [vmem:[%s2] sm:$0x1]
    %v86 = vlaneseq
    %v87 = vshrl.u32 %v86, 7
    %v88 = vsub.s32 0, %v87
    %v89 = vrot.slane %v84, %v88
    %91 = vmatprep.subr.mxu0 0.0
    %92 = vmatpush1.msra.mxu0 %v68
    %93 = vmatprep.subr.mxu0 0.0
    %94 = vmatpush1.msra.mxu0 %v69
    %95 = vmatprep.subr.mxu0 0.0
    %96 = vmatpush1.msra.mxu0 %v70
    %97 = vmatprep.subr.mxu0 0.0
    %98 = vmatpush1.msra.mxu0 %v71
    %99 = vmatprep.subr.mxu0 0.0
    %100 = vmatpush1.msra.mxu0 %v72
    %101 = vmatprep.subr.mxu0 0.0
    %102 = vmatpush1.msra.mxu0 %v73
    %103 = vmatprep.subr.mxu0 0.0
    %104 = vmatpush1.msra.mxu0 %v74
    %105 = vmatprep.subr.mxu0 0.0
    %106 = vmatpush1.msra.mxu0 %v75
    %107 = vmatprep.subr.mxu0 0.0
    %108 = vmatpush1.msra.mxu0 %v76
    %109 = vmatprep.subr.mxu0 0.0
    %110 = vmatpush1.msra.mxu0 %v77
    %111 = vmatprep.subr.mxu0 0.0
    %112 = vmatpush1.msra.mxu0 %v78
    %113 = vmatprep.subr.mxu0 0.0
    %114 = vmatpush1.msra.mxu0 %v79
    %115 = vmatprep.subr.mxu0 0.0
    %116 = vmatpush1.msra.mxu0 %v80
    %117 = vmatprep.subr.mxu0 0.0
    %118 = vmatpush1.msra.mxu0 %v81
    %119 = vmatprep.subr.mxu0 0.0
    %120 = vmatpush1.msra.mxu0 %v82
    %121 = vmatprep.subr.mxu0 0.0
    %122 = vmatpush1.msra.mxu0 %v83
    %123 = vmatprep.subr.mxu0 0.0
    %124 = vmatpush1.msra.mxu0 0.0
    %125 = vmatprep.subr.mxu0 0.0
    %126 = vmatpush1.msra.mxu0 0.0
    %127 = vmatprep.subr.mxu0 0.0
    %128 = vmatpush1.msra.mxu0 0.0
    %129 = vmatprep.subr.mxu0 0.0
    %130 = vmatpush1.msra.mxu0 0.0
    %131 = vmatprep.subr.mxu0 0.0
    %132 = vmatpush1.msra.mxu0 0.0
    %133 = vmatprep.subr.mxu0 0.0
    %134 = vmatpush1.msra.mxu0 0.0
    %135 = vmatprep.subr.mxu0 0.0
    %136 = vmatpush1.msra.mxu0 0.0
    %137 = vmatprep.subr.mxu0 0.0
    %138 = vmatpush1.msra.mxu0 0.0
    %139 = vmatprep.subr.mxu0 0.0
    %140 = vmatpush1.msra.mxu0 0.0
    %141 = vmatprep.subr.mxu0 0.0
    %142 = vmatpush1.msra.mxu0 0.0
    %143 = vmatprep.subr.mxu0 0.0
    %144 = vmatpush1.msra.mxu0 0.0
    %145 = vmatprep.subr.mxu0 0.0
    %146 = vmatpush1.msra.mxu0 0.0
    %147 = vmatprep.subr.mxu0 0.0
    %148 = vmatpush1.msra.mxu0 0.0
    %149 = vmatprep.subr.mxu0 0.0
    %150 = vmatpush1.msra.mxu0 0.0
    %151 = vmatprep.subr.mxu0 0.0
    %152 = vmatpush1.msra.mxu0 0.0
    %153 = vmatprep.subr.mxu0 0.0
    %154 = vmatpush1.msra.mxu0 0.0
    %155 = vmatprep.mubr.f32.mxu0 0.0
    %156 = vmatmul.mubr.f32.gmra.mrb[0].mxu0 %v67
    %v157 = vpop.f32.mrb[0].mxu0
    %v158 = vadd.f32 %v89, %v157
    %v159 = vpop.f32.mrb[0].mxu0
    %160 = vdwg.mxu0
    %v161 = vtanh.pop %v158
    %v162 = vld [vmem:[#allocation4] sm:$0xff]
    %v163 = vld [vmem:[#allocation4 + $0x8] sm:$0xff]
    %v164 = vld [vmem:[#allocation4 + $0x10] sm:$0xff]
    %v165 = vld [vmem:[#allocation4 + $0x18] sm:$0xff]
    %v166 = vld [vmem:[#allocation4 + $0x20] sm:$0xff]
    %v167 = vld [vmem:[#allocation4 + $0x28] sm:$0xff]
    %v168 = vld [vmem:[#allocation4 + $0x30] sm:$0xff]
    %v169 = vld [vmem:[#allocation4 + $0x38] sm:$0xff]
    %v170 = vld [vmem:[#allocation4 + $0x40] sm:$0xff]
    %v171 = vld [vmem:[#allocation4 + $0x48] sm:$0xff]
    %v172 = vld [vmem:[#allocation4 + $0x50] sm:$0xff]
    %v173 = vld [vmem:[#allocation4 + $0x58] sm:$0xff]
    %v174 = vld [vmem:[#allocation4 + $0x60] sm:$0xff]
    %v175 = vld [vmem:[#allocation4 + $0x68] sm:$0xff]
    %v176 = vld [vmem:[#allocation4 + $0x70] sm:$0xff]
    %v177 = vld [vmem:[#allocation4 + $0x78] sm:$0xff]
    %v178 = vld [vmem:[#allocation4 + $0x80] sm:$0xff]
    %v179 = vld [vmem:[#allocation4 + $0x88] sm:$0xff]
    %v180 = vld [vmem:[#allocation4 + $0x90] sm:$0xff]
    %v181 = vld [vmem:[#allocation4 + $0x98] sm:$0xff]
    %v182 = vld [vmem:[#allocation4 + $0xa0] sm:$0xff]
    %v183 = vld [vmem:[#allocation4 + $0xa8] sm:$0xff]
    %v184 = vld [vmem:[#allocation4 + $0xb0] sm:$0xff]
    %v185 = vld [vmem:[#allocation4 + $0xb8] sm:$0xff]
    %v186 = vld [vmem:[#allocation4 + $0xc0] sm:$0xff]
    %v187 = vld [vmem:[#allocation4 + $0xc8] sm:$0xff]
    %v188 = vld [vmem:[#allocation4 + $0xd0] sm:$0xff]
    %v189 = vld [vmem:[#allocation4 + $0xd8] sm:$0xff]
    %v190 = vld [vmem:[#allocation4 + $0xe0] sm:$0xff]
    %v191 = vld [vmem:[#allocation4 + $0xe8] sm:$0xff]
    %v192 = vld [vmem:[#allocation4 + $0xf0] sm:$0xff]
    %v193 = vld [vmem:[#allocation4 + $0xf8] sm:$0xff]
    %v194 = vld [vmem:[#allocation4 + $0x100] sm:$0xff]
    %v195 = vld [vmem:[#allocation4 + $0x108] sm:$0xff]
    %v196 = vld [vmem:[#allocation4 + $0x110] sm:$0xff]
    %v197 = vld [vmem:[#allocation4 + $0x118] sm:$0xff]
    %v198 = vld [vmem:[#allocation4 + $0x120] sm:$0xff]
    %v199 = vld [vmem:[#allocation4 + $0x128] sm:$0xff]
    %v200 = vld [vmem:[#allocation4 + $0x130] sm:$0xff]
    %v201 = vld [vmem:[#allocation4 + $0x138] sm:$0xff]
    %v202 = vld [vmem:[#allocation4 + $0x140] sm:$0xff]
    %v203 = vld [vmem:[#allocation4 + $0x148] sm:$0xff]
    %v204 = vld [vmem:[#allocation4 + $0x150] sm:$0xff]
    %v205 = vld [vmem:[#allocation4 + $0x158] sm:$0xff]
    %v206 = vld [vmem:[#allocation4 + $0x160] sm:$0xff]
    %v207 = vld [vmem:[#allocation4 + $0x168] sm:$0xff]
    %v208 = vld [vmem:[#allocation4 + $0x170] sm:$0xff]
    %v209 = vld [vmem:[#allocation4 + $0x178] sm:$0xff]
    %v210 = vld [vmem:[#allocation4 + $0x180] sm:$0xff]
    %v211 = vld [vmem:[#allocation4 + $0x188] sm:$0xff]
    %v212 = vld [vmem:[#allocation4 + $0x190] sm:$0xff]
    %v213 = vld [vmem:[#allocation4 + $0x198] sm:$0xff]
    %v214 = vld [vmem:[#allocation4 + $0x1a0] sm:$0xff]
    %v215 = vld [vmem:[#allocation4 + $0x1a8] sm:$0xff]
    %v216 = vld [vmem:[#allocation4 + $0x1b0] sm:$0xff]
    %v217 = vld [vmem:[#allocation4 + $0x1b8] sm:$0xff]
    %v218 = vld [vmem:[#allocation4 + $0x1c0] sm:$0xff]
    %v219 = vld [vmem:[#allocation4 + $0x1c8] sm:$0xff]
    %v220 = vld [vmem:[#allocation4 + $0x1d0] sm:$0xff]
    %v221 = vld [vmem:[#allocation4 + $0x1d8] sm:$0xff]
    %v222 = vld [vmem:[#allocation4 + $0x1e0] sm:$0xff]
    %v223 = vld [vmem:[#allocation4 + $0x1e8] sm:$0xff]
    %v224 = vld [vmem:[#allocation4 + $0x1f0] sm:$0xff]
    %v225 = vld [vmem:[#allocation4 + $0x1f8] sm:$0xff]
    %v226 = vld [vmem:[#allocation4 + $0x200] sm:$0xff]
    %v227 = vld [vmem:[#allocation4 + $0x208] sm:$0xff]
    %v228 = vld [vmem:[#allocation4 + $0x210] sm:$0xff]
    %v229 = vld [vmem:[#allocation4 + $0x218] sm:$0xff]
    %v230 = vld [vmem:[#allocation4 + $0x220] sm:$0xff]
    %v231 = vld [vmem:[#allocation4 + $0x228] sm:$0xff]
    %v232 = vld [vmem:[#allocation4 + $0x230] sm:$0xff]
    %v233 = vld [vmem:[#allocation4 + $0x238] sm:$0xff]
    %v234 = vld [vmem:[#allocation4 + $0x240] sm:$0xff]
    %v235 = vld [vmem:[#allocation4 + $0x248] sm:$0xff]
    %v236 = vld [vmem:[#allocation4 + $0x250] sm:$0xff]
    %v237 = vld [vmem:[#allocation4 + $0x258] sm:$0xff]
    %v238 = vld [vmem:[#allocation4 + $0x260] sm:$0xff]
    %v239 = vld [vmem:[#allocation4 + $0x268] sm:$0xff]
    %v240 = vld [vmem:[#allocation4 + $0x270] sm:$0xff]
    %v241 = vld [vmem:[#allocation4 + $0x278] sm:$0xff]
    %v242 = vld [vmem:[%s4] sm:$0x1f]
    %v244 = vlaneseq
    %v245 = vshrl.u32 %v244, 7
    %v246 = vsub.s32 0, %v245
    %v247 = vrot.slane %v242, %v246
    %v248 = vlaneseq
    %v249 = vshrl.u32 %v248, 7
    %v250 = vsub.s32 1, %v249
    %v251 = vrot.slane %v242, %v250
    %v252 = vlaneseq
    %v253 = vshrl.u32 %v252, 7
    %v254 = vsub.s32 2, %v253
    %v255 = vrot.slane %v242, %v254
    %v256 = vlaneseq
    %v257 = vshrl.u32 %v256, 7
    %v258 = vsub.s32 3, %v257
    %v259 = vrot.slane %v242, %v258
    %v260 = vlaneseq
    %v261 = vshrl.u32 %v260, 7
    %v262 = vsub.s32 4, %v261
    %v263 = vrot.slane %v242, %v262
    %269 = vmatprep.subr.mxu0 %v163
    %270 = vmatpush1.msra.mxu0 %v162
    %271 = vmatprep.subr.mxu0 %v168
    %272 = vmatpush1.msra.mxu0 %v167
    %273 = vmatprep.subr.mxu0 %v173
    %274 = vmatpush1.msra.mxu0 %v172
    %275 = vmatprep.subr.mxu0 %v178
    %276 = vmatpush1.msra.mxu0 %v177
    %277 = vmatprep.subr.mxu0 %v183
    %278 = vmatpush1.msra.mxu0 %v182
    %279 = vmatprep.subr.mxu0 %v188
    %280 = vmatpush1.msra.mxu0 %v187
    %281 = vmatprep.subr.mxu0 %v193
    %282 = vmatpush1.msra.mxu0 %v192
    %283 = vmatprep.subr.mxu0 %v198
    %284 = vmatpush1.msra.mxu0 %v197
    %285 = vmatprep.subr.mxu0 %v203
    %286 = vmatpush1.msra.mxu0 %v202
    %287 = vmatprep.subr.mxu0 %v208
    %288 = vmatpush1.msra.mxu0 %v207
    %289 = vmatprep.subr.mxu0 %v213
    %290 = vmatpush1.msra.mxu0 %v212
    %291 = vmatprep.subr.mxu0 %v218
    %292 = vmatpush1.msra.mxu0 %v217
    %293 = vmatprep.subr.mxu0 %v223
    %294 = vmatpush1.msra.mxu0 %v222
    %295 = vmatprep.subr.mxu0 %v228
    %296 = vmatpush1.msra.mxu0 %v227
    %297 = vmatprep.subr.mxu0 %v233
    %298 = vmatpush1.msra.mxu0 %v232
    %299 = vmatprep.subr.mxu0 %v238
    %300 = vmatpush1.msra.mxu0 %v237
    %301 = vmatprep.subr.mxu0 0.0
    %302 = vmatpush1.msra.mxu0 0.0
    %303 = vmatprep.subr.mxu0 0.0
    %304 = vmatpush1.msra.mxu0 0.0
    %305 = vmatprep.subr.mxu0 0.0
    %306 = vmatpush1.msra.mxu0 0.0
    %307 = vmatprep.subr.mxu0 0.0
    %308 = vmatpush1.msra.mxu0 0.0
    %309 = vmatprep.subr.mxu0 0.0
    %310 = vmatpush1.msra.mxu0 0.0
    %311 = vmatprep.subr.mxu0 0.0
    %312 = vmatpush1.msra.mxu0 0.0
    %313 = vmatprep.subr.mxu0 0.0
    %314 = vmatpush1.msra.mxu0 0.0
    %315 = vmatprep.subr.mxu0 0.0
    %316 = vmatpush1.msra.mxu0 0.0
    %317 = vmatprep.subr.mxu0 0.0
    %318 = vmatpush1.msra.mxu0 0.0
    %319 = vmatprep.subr.mxu0 0.0
    %320 = vmatpush1.msra.mxu0 0.0
    %321 = vmatprep.subr.mxu0 0.0
    %322 = vmatpush1.msra.mxu0 0.0
    %323 = vmatprep.subr.mxu0 0.0
    %324 = vmatpush1.msra.mxu0 0.0
    %325 = vmatprep.subr.mxu0 0.0
    %326 = vmatpush1.msra.mxu0 0.0
    %327 = vmatprep.subr.mxu0 0.0
    %328 = vmatpush1.msra.mxu0 0.0
    %329 = vmatprep.subr.mxu0 0.0
    %330 = vmatpush1.msra.mxu0 0.0
    %331 = vmatprep.subr.mxu0 0.0
    %332 = vmatpush1.msra.mxu0 0.0
    %333 = vmatprep.mubr.f32.mxu0 0.0
    %334 = vmatmul.mubr.f32.gmra.mrb[0].mxu0 %v161
    %v335 = vpop.f32.mrb[0].mxu0
    %v336 = vadd.f32 %v247, %v335
    %v337 = vpop.f32.mrb[0].mxu0
    %v338 = vadd.f32 %v251, %v337
    %339 = vdwg.mxu0
    %340 = vmatprep.subr.mxu0 %v165
    %341 = vmatpush1.msra.mxu0 %v164
    %342 = vmatprep.subr.mxu0 %v170
    %343 = vmatpush1.msra.mxu0 %v169
    %344 = vmatprep.subr.mxu0 %v175
    %345 = vmatpush1.msra.mxu0 %v174
    %346 = vmatprep.subr.mxu0 %v180
    %347 = vmatpush1.msra.mxu0 %v179
    %348 = vmatprep.subr.mxu0 %v185
    %349 = vmatpush1.msra.mxu0 %v184
    %350 = vmatprep.subr.mxu0 %v190
    %351 = vmatpush1.msra.mxu0 %v189
    %352 = vmatprep.subr.mxu0 %v195
    %353 = vmatpush1.msra.mxu0 %v194
    %354 = vmatprep.subr.mxu0 %v200
    %355 = vmatpush1.msra.mxu0 %v199
    %356 = vmatprep.subr.mxu0 %v205
    %357 = vmatpush1.msra.mxu0 %v204
    %358 = vmatprep.subr.mxu0 %v210
    %359 = vmatpush1.msra.mxu0 %v209
    %360 = vmatprep.subr.mxu0 %v215
    %361 = vmatpush1.msra.mxu0 %v214
    %362 = vmatprep.subr.mxu0 %v220
    %363 = vmatpush1.msra.mxu0 %v219
    %364 = vmatprep.subr.mxu0 %v225
    %365 = vmatpush1.msra.mxu0 %v224
    %366 = vmatprep.subr.mxu0 %v230
    %367 = vmatpush1.msra.mxu0 %v229
    %368 = vmatprep.subr.mxu0 %v235
    %369 = vmatpush1.msra.mxu0 %v234
    %370 = vmatprep.subr.mxu0 %v240
    %371 = vmatpush1.msra.mxu0 %v239
    %372 = vmatprep.subr.mxu0 0.0
    %373 = vmatpush1.msra.mxu0 0.0
    %374 = vmatprep.subr.mxu0 0.0
    %375 = vmatpush1.msra.mxu0 0.0
    %376 = vmatprep.subr.mxu0 0.0
    %377 = vmatpush1.msra.mxu0 0.0
    %378 = vmatprep.subr.mxu0 0.0
    %379 = vmatpush1.msra.mxu0 0.0
    %380 = vmatprep.subr.mxu0 0.0
    %381 = vmatpush1.msra.mxu0 0.0
    %382 = vmatprep.subr.mxu0 0.0
    %383 = vmatpush1.msra.mxu0 0.0
    %384 = vmatprep.subr.mxu0 0.0
    %385 = vmatpush1.msra.mxu0 0.0
    %386 = vmatprep.subr.mxu0 0.0
    %387 = vmatpush1.msra.mxu0 0.0
    %388 = vmatprep.subr.mxu0 0.0
    %389 = vmatpush1.msra.mxu0 0.0
    %390 = vmatprep.subr.mxu0 0.0
    %391 = vmatpush1.msra.mxu0 0.0
    %392 = vmatprep.subr.mxu0 0.0
    %393 = vmatpush1.msra.mxu0 0.0
    %394 = vmatprep.subr.mxu0 0.0
    %395 = vmatpush1.msra.mxu0 0.0
    %396 = vmatprep.subr.mxu0 0.0
    %397 = vmatpush1.msra.mxu0 0.0
    %398 = vmatprep.subr.mxu0 0.0
    %399 = vmatpush1.msra.mxu0 0.0
    %400 = vmatprep.subr.mxu0 0.0
    %401 = vmatpush1.msra.mxu0 0.0
    %402 = vmatprep.subr.mxu0 0.0
    %403 = vmatpush1.msra.mxu0 0.0
    %404 = vmatprep.mubr.f32.mxu0 0.0
    %405 = vmatmul.mubr.f32.gmra.mrb[0].mxu0 %v161
    %v406 = vpop.f32.mrb[0].mxu0
    %v407 = vadd.f32 %v255, %v406
    %v408 = vpop.f32.mrb[0].mxu0
    %v409 = vadd.f32 %v259, %v408
    %410 = vdwg.mxu0
    %411 = vmatprep.subr.mxu0 0.0
    %412 = vmatpush1.msra.mxu0 %v166
    %413 = vmatprep.subr.mxu0 0.0
    %414 = vmatpush1.msra.mxu0 %v171
    %415 = vmatprep.subr.mxu0 0.0
    %416 = vmatpush1.msra.mxu0 %v176
    %417 = vmatprep.subr.mxu0 0.0
    %418 = vmatpush1.msra.mxu0 %v181
    %419 = vmatprep.subr.mxu0 0.0
    %420 = vmatpush1.msra.mxu0 %v186
    %421 = vmatprep.subr.mxu0 0.0
    %422 = vmatpush1.msra.mxu0 %v191
    %423 = vmatprep.subr.mxu0 0.0
    %424 = vmatpush1.msra.mxu0 %v196
    %425 = vmatprep.subr.mxu0 0.0
    %426 = vmatpush1.msra.mxu0 %v201
    %427 = vmatprep.subr.mxu0 0.0
    %428 = vmatpush1.msra.mxu0 %v206
    %429 = vmatprep.subr.mxu0 0.0
    %430 = vmatpush1.msra.mxu0 %v211
    %431 = vmatprep.subr.mxu0 0.0
    %432 = vmatpush1.msra.mxu0 %v216
    %433 = vmatprep.subr.mxu0 0.0
    %434 = vmatpush1.msra.mxu0 %v221
    %435 = vmatprep.subr.mxu0 0.0
    %436 = vmatpush1.msra.mxu0 %v226
    %437 = vmatprep.subr.mxu0 0.0
    %438 = vmatpush1.msra.mxu0 %v231
    %439 = vmatprep.subr.mxu0 0.0
    %440 = vmatpush1.msra.mxu0 %v236
    %441 = vmatprep.subr.mxu0 0.0
    %442 = vmatpush1.msra.mxu0 %v241
    %443 = vmatprep.subr.mxu0 0.0
    %444 = vmatpush1.msra.mxu0 0.0
    %445 = vmatprep.subr.mxu0 0.0
    %446 = vmatpush1.msra.mxu0 0.0
    %447 = vmatprep.subr.mxu0 0.0
    %448 = vmatpush1.msra.mxu0 0.0
    %449 = vmatprep.subr.mxu0 0.0
    %450 = vmatpush1.msra.mxu0 0.0
    %451 = vmatprep.subr.mxu0 0.0
    %452 = vmatpush1.msra.mxu0 0.0
    %453 = vmatprep.subr.mxu0 0.0
    %454 = vmatpush1.msra.mxu0 0.0
    %455 = vmatprep.subr.mxu0 0.0
    %456 = vmatpush1.msra.mxu0 0.0
    %457 = vmatprep.subr.mxu0 0.0
    %458 = vmatpush1.msra.mxu0 0.0
    %459 = vmatprep.subr.mxu0 0.0
    %460 = vmatpush1.msra.mxu0 0.0
    %461 = vmatprep.subr.mxu0 0.0
    %462 = vmatpush1.msra.mxu0 0.0
    %463 = vmatprep.subr.mxu0 0.0
    %464 = vmatpush1.msra.mxu0 0.0
    %465 = vmatprep.subr.mxu0 0.0
    %466 = vmatpush1.msra.mxu0 0.0
    %467 = vmatprep.subr.mxu0 0.0
    %468 = vmatpush1.msra.mxu0 0.0
    %469 = vmatprep.subr.mxu0 0.0
    %470 = vmatpush1.msra.mxu0 0.0
    %471 = vmatprep.subr.mxu0 0.0
    %472 = vmatpush1.msra.mxu0 0.0
    %473 = vmatprep.subr.mxu0 0.0
    %474 = vmatpush1.msra.mxu0 0.0
    %475 = vmatprep.mubr.f32.mxu0 0.0
    %476 = vmatmul.mubr.f32.gmra.mrb[0].mxu0 %v161
    %v477 = vpop.f32.mrb[0].mxu0
    %v478 = vadd.f32 %v263, %v477
    %v479 = vpop.f32.mrb[0].mxu0
    %480 = vdwg.mxu0
    %v481 = vtanh.pop %v336
    %v482 = vtanh.pop %v338
    %v483 = vtanh.pop %v407
    %v484 = vtanh.pop %v409
    %v485 = vtanh.pop %v478
    %v486 = vld [vmem:[#allocation6] sm:$0xff]
    %v487 = vld [vmem:[#allocation6 + $0x8] sm:$0xff]
    %v488 = vld [vmem:[#allocation6 + $0x10] sm:$0xff]
    %v489 = vld [vmem:[#allocation6 + $0x18] sm:$0xff]
    %v490 = vld [vmem:[#allocation6 + $0x20] sm:$0xff]
    %v491 = vld [vmem:[#allocation6 + $0x28] sm:$0xff]
    %v492 = vld [vmem:[#allocation6 + $0x30] sm:$0xff]
    %v493 = vld [vmem:[#allocation6 + $0x38] sm:$0xff]
    %v494 = vld [vmem:[#allocation6 + $0x40] sm:$0xff]
    %v495 = vld [vmem:[#allocation6 + $0x48] sm:$0xff]
    %v496 = vld [vmem:[#allocation6 + $0x50] sm:$0xff]
    %v497 = vld [vmem:[#allocation6 + $0x58] sm:$0xff]
    %v498 = vld [vmem:[#allocation6 + $0x60] sm:$0xff]
    %v499 = vld [vmem:[#allocation6 + $0x68] sm:$0xff]
    %v500 = vld [vmem:[#allocation6 + $0x70] sm:$0xff]
    %v501 = vld [vmem:[#allocation6 + $0x78] sm:$0xff]
    %v502 = vld [vmem:[#allocation6 + $0x80] sm:$0xff]
    %v503 = vld [vmem:[#allocation6 + $0x88] sm:$0xff]
    %v504 = vld [vmem:[#allocation6 + $0x90] sm:$0xff]
    %v505 = vld [vmem:[#allocation6 + $0x98] sm:$0xff]
    %v506 = vld [vmem:[#allocation6 + $0xa0] sm:$0xff]
    %v507 = vld [vmem:[#allocation6 + $0xa8] sm:$0xff]
    %v508 = vld [vmem:[#allocation6 + $0xb0] sm:$0xff]
    %v509 = vld [vmem:[#allocation6 + $0xb8] sm:$0xff]
    %v510 = vld [vmem:[#allocation6 + $0xc0] sm:$0xff]
    %v511 = vld [vmem:[#allocation6 + $0xc8] sm:$0xff]
    %v512 = vld [vmem:[#allocation6 + $0xd0] sm:$0xff]
    %v513 = vld [vmem:[#allocation6 + $0xd8] sm:$0xff]
    %v514 = vld [vmem:[#allocation6 + $0xe0] sm:$0xff]
    %v515 = vld [vmem:[#allocation6 + $0xe8] sm:$0xff]
    %v516 = vld [vmem:[#allocation6 + $0xf0] sm:$0xff]
    %v517 = vld [vmem:[#allocation6 + $0xf8] sm:$0xff]
    %v518 = vld [vmem:[#allocation6 + $0x100] sm:$0xff]
    %v519 = vld [vmem:[#allocation6 + $0x108] sm:$0xff]
    %v520 = vld [vmem:[#allocation6 + $0x110] sm:$0xff]
    %v521 = vld [vmem:[#allocation6 + $0x118] sm:$0xff]
    %v522 = vld [vmem:[#allocation6 + $0x120] sm:$0xff]
    %v523 = vld [vmem:[#allocation6 + $0x128] sm:$0xff]
    %v524 = vld [vmem:[#allocation6 + $0x130] sm:$0xff]
    %v525 = vld [vmem:[#allocation6 + $0x138] sm:$0xff]
    %v526 = vld [vmem:[#allocation6 + $0x140] sm:$0xff]
    %v527 = vld [vmem:[#allocation6 + $0x148] sm:$0xff]
    %v528 = vld [vmem:[#allocation6 + $0x150] sm:$0xff]
    %v529 = vld [vmem:[#allocation6 + $0x158] sm:$0xff]
    %v530 = vld [vmem:[#allocation6 + $0x160] sm:$0xff]
    %v531 = vld [vmem:[#allocation6 + $0x168] sm:$0xff]
    %v532 = vld [vmem:[#allocation6 + $0x170] sm:$0xff]
    %v533 = vld [vmem:[#allocation6 + $0x178] sm:$0xff]
    %v534 = vld [vmem:[#allocation6 + $0x180] sm:$0xff]
    %v535 = vld [vmem:[#allocation6 + $0x188] sm:$0xff]
    %v536 = vld [vmem:[#allocation6 + $0x190] sm:$0xff]
    %v537 = vld [vmem:[#allocation6 + $0x198] sm:$0xff]
    %v538 = vld [vmem:[#allocation6 + $0x1a0] sm:$0xff]
    %v539 = vld [vmem:[#allocation6 + $0x1a8] sm:$0xff]
    %v540 = vld [vmem:[#allocation6 + $0x1b0] sm:$0xff]
    %v541 = vld [vmem:[#allocation6 + $0x1b8] sm:$0xff]
    %v542 = vld [vmem:[#allocation6 + $0x1c0] sm:$0xff]
    %v543 = vld [vmem:[#allocation6 + $0x1c8] sm:$0xff]
    %v544 = vld [vmem:[#allocation6 + $0x1d0] sm:$0xff]
    %v545 = vld [vmem:[#allocation6 + $0x1d8] sm:$0xff]
    %v546 = vld [vmem:[#allocation6 + $0x1e0] sm:$0xff]
    %v547 = vld [vmem:[#allocation6 + $0x1e8] sm:$0xff]
    %v548 = vld [vmem:[#allocation6 + $0x1f0] sm:$0xff]
    %v549 = vld [vmem:[#allocation6 + $0x1f8] sm:$0xff]
    %v550 = vld [vmem:[#allocation6 + $0x200] sm:$0xff]
    %v551 = vld [vmem:[#allocation6 + $0x208] sm:$0xff]
    %v552 = vld [vmem:[#allocation6 + $0x210] sm:$0xff]
    %v553 = vld [vmem:[#allocation6 + $0x218] sm:$0xff]
    %v554 = vld [vmem:[#allocation6 + $0x220] sm:$0xff]
    %v555 = vld [vmem:[#allocation6 + $0x228] sm:$0xff]
    %v556 = vld [vmem:[#allocation6 + $0x230] sm:$0xff]
    %v557 = vld [vmem:[#allocation6 + $0x238] sm:$0xff]
    %v558 = vld [vmem:[#allocation6 + $0x240] sm:$0xff]
    %v559 = vld [vmem:[#allocation6 + $0x248] sm:$0xff]
    %v560 = vld [vmem:[#allocation6 + $0x250] sm:$0xff]
    %v561 = vld [vmem:[#allocation6 + $0x258] sm:$0xff]
    %v562 = vld [vmem:[#allocation6 + $0x260] sm:$0xff]
    %v563 = vld [vmem:[#allocation6 + $0x268] sm:$0xff]
    %v564 = vld [vmem:[#allocation6 + $0x270] sm:$0xff]
    %v565 = vld [vmem:[#allocation6 + $0x278] sm:$0xff]
    %v566 = vld [vmem:[%s6] sm:$0x1]
    %v568 = vlaneseq
    %v569 = vshrl.u32 %v568, 7
    %v570 = vsub.s32 0, %v569
    %v571 = vrot.slane %v566, %v570
    %573 = vmatprep.subr.mxu0 0.0
    %574 = vmatpush1.msra.mxu0 %v486
    %575 = vmatprep.subr.mxu0 0.0
    %576 = vmatpush1.msra.mxu0 %v487
    %577 = vmatprep.subr.mxu0 0.0
    %578 = vmatpush1.msra.mxu0 %v488
    %579 = vmatprep.subr.mxu0 0.0
    %580 = vmatpush1.msra.mxu0 %v489
    %581 = vmatprep.subr.mxu0 0.0
    %582 = vmatpush1.msra.mxu0 %v490
    %583 = vmatprep.subr.mxu0 0.0
    %584 = vmatpush1.msra.mxu0 %v491
    %585 = vmatprep.subr.mxu0 0.0
    %586 = vmatpush1.msra.mxu0 %v492
    %587 = vmatprep.subr.mxu0 0.0
    %588 = vmatpush1.msra.mxu0 %v493
    %589 = vmatprep.subr.mxu0 0.0
    %590 = vmatpush1.msra.mxu0 %v494
    %591 = vmatprep.subr.mxu0 0.0
    %592 = vmatpush1.msra.mxu0 %v495
    %593 = vmatprep.subr.mxu0 0.0
    %594 = vmatpush1.msra.mxu0 %v496
    %595 = vmatprep.subr.mxu0 0.0
    %596 = vmatpush1.msra.mxu0 %v497
    %597 = vmatprep.subr.mxu0 0.0
    %598 = vmatpush1.msra.mxu0 %v498
    %599 = vmatprep.subr.mxu0 0.0
    %600 = vmatpush1.msra.mxu0 %v499
    %601 = vmatprep.subr.mxu0 0.0
    %602 = vmatpush1.msra.mxu0 %v500
    %603 = vmatprep.subr.mxu0 0.0
    %604 = vmatpush1.msra.mxu0 %v501
    %605 = vmatprep.subr.mxu0 0.0
    %606 = vmatpush1.msra.mxu0 %v502
    %607 = vmatprep.subr.mxu0 0.0
    %608 = vmatpush1.msra.mxu0 %v503
    %609 = vmatprep.subr.mxu0 0.0
    %610 = vmatpush1.msra.mxu0 %v504
    %611 = vmatprep.subr.mxu0 0.0
    %612 = vmatpush1.msra.mxu0 %v505
    %613 = vmatprep.subr.mxu0 0.0
    %614 = vmatpush1.msra.mxu0 %v506
    %615 = vmatprep.subr.mxu0 0.0
    %616 = vmatpush1.msra.mxu0 %v507
    %617 = vmatprep.subr.mxu0 0.0
    %618 = vmatpush1.msra.mxu0 %v508
    %619 = vmatprep.subr.mxu0 0.0
    %620 = vmatpush1.msra.mxu0 %v509
    %621 = vmatprep.subr.mxu0 0.0
    %622 = vmatpush1.msra.mxu0 %v510
    %623 = vmatprep.subr.mxu0 0.0
    %624 = vmatpush1.msra.mxu0 %v511
    %625 = vmatprep.subr.mxu0 0.0
    %626 = vmatpush1.msra.mxu0 %v512
    %627 = vmatprep.subr.mxu0 0.0
    %628 = vmatpush1.msra.mxu0 %v513
    %629 = vmatprep.subr.mxu0 0.0
    %630 = vmatpush1.msra.mxu0 %v514
    %631 = vmatprep.subr.mxu0 0.0
    %632 = vmatpush1.msra.mxu0 %v515
    %633 = vmatprep.subr.mxu0 0.0
    %634 = vmatpush1.msra.mxu0 %v516
    %635 = vmatprep.subr.mxu0 0.0
    %636 = vmatpush1.msra.mxu0 %v517
    %637 = vmatprep.mubr.f32.mxu0 %v482
    %638 = vmatmul.mubr.f32.gmra.mrb[0].mxu0 %v481
    %v639 = vpop.f32.mrb[0].mxu0
    %v640 = vadd.f32 %v571, %v639
    %v641 = vpop.f32.mrb[0].mxu0
    %642 = vdwg.mxu0
    %643 = vmatprep.subr.mxu0 0.0
    %644 = vmatpush1.msra.mxu0 %v518
    %645 = vmatprep.subr.mxu0 0.0
    %646 = vmatpush1.msra.mxu0 %v519
    %647 = vmatprep.subr.mxu0 0.0
    %648 = vmatpush1.msra.mxu0 %v520
    %649 = vmatprep.subr.mxu0 0.0
    %650 = vmatpush1.msra.mxu0 %v521
    %651 = vmatprep.subr.mxu0 0.0
    %652 = vmatpush1.msra.mxu0 %v522
    %653 = vmatprep.subr.mxu0 0.0
    %654 = vmatpush1.msra.mxu0 %v523
    %655 = vmatprep.subr.mxu0 0.0
    %656 = vmatpush1.msra.mxu0 %v524
    %657 = vmatprep.subr.mxu0 0.0
    %658 = vmatpush1.msra.mxu0 %v525
    %659 = vmatprep.subr.mxu0 0.0
    %660 = vmatpush1.msra.mxu0 %v526
    %661 = vmatprep.subr.mxu0 0.0
    %662 = vmatpush1.msra.mxu0 %v527
    %663 = vmatprep.subr.mxu0 0.0
    %664 = vmatpush1.msra.mxu0 %v528
    %665 = vmatprep.subr.mxu0 0.0
    %666 = vmatpush1.msra.mxu0 %v529
    %667 = vmatprep.subr.mxu0 0.0
    %668 = vmatpush1.msra.mxu0 %v530
    %669 = vmatprep.subr.mxu0 0.0
    %670 = vmatpush1.msra.mxu0 %v531
    %671 = vmatprep.subr.mxu0 0.0
    %672 = vmatpush1.msra.mxu0 %v532
    %673 = vmatprep.subr.mxu0 0.0
    %674 = vmatpush1.msra.mxu0 %v533
    %675 = vmatprep.subr.mxu0 0.0
    %676 = vmatpush1.msra.mxu0 %v534
    %677 = vmatprep.subr.mxu0 0.0
    %678 = vmatpush1.msra.mxu0 %v535
    %679 = vmatprep.subr.mxu0 0.0
    %680 = vmatpush1.msra.mxu0 %v536
    %681 = vmatprep.subr.mxu0 0.0
    %682 = vmatpush1.msra.mxu0 %v537
    %683 = vmatprep.subr.mxu0 0.0
    %684 = vmatpush1.msra.mxu0 %v538
    %685 = vmatprep.subr.mxu0 0.0
    %686 = vmatpush1.msra.mxu0 %v539
    %687 = vmatprep.subr.mxu0 0.0
    %688 = vmatpush1.msra.mxu0 %v540
    %689 = vmatprep.subr.mxu0 0.0
    %690 = vmatpush1.msra.mxu0 %v541
    %691 = vmatprep.subr.mxu0 0.0
    %692 = vmatpush1.msra.mxu0 %v542
    %693 = vmatprep.subr.mxu0 0.0
    %694 = vmatpush1.msra.mxu0 %v543
    %695 = vmatprep.subr.mxu0 0.0
    %696 = vmatpush1.msra.mxu0 %v544
    %697 = vmatprep.subr.mxu0 0.0
    %698 = vmatpush1.msra.mxu0 %v545
    %699 = vmatprep.subr.mxu0 0.0
    %700 = vmatpush1.msra.mxu0 %v546
    %701 = vmatprep.subr.mxu0 0.0
    %702 = vmatpush1.msra.mxu0 %v547
    %703 = vmatprep.subr.mxu0 0.0
    %704 = vmatpush1.msra.mxu0 %v548
    %705 = vmatprep.subr.mxu0 0.0
    %706 = vmatpush1.msra.mxu0 %v549
    %707 = vmatprep.mubr.f32.mxu0 %v484
    %708 = vmatmul.mubr.f32.gmra.mrb[0].mxu0 %v483
    %v709 = vpop.f32.mrb[0].mxu0
    %v710 = vadd.f32 %v640, %v709
    %v711 = vpop.f32.mrb[0].mxu0
    %712 = vdwg.mxu0
    %713 = vmatprep.subr.mxu0 0.0
    %714 = vmatpush1.msra.mxu0 %v550
    %715 = vmatprep.subr.mxu0 0.0
    %716 = vmatpush1.msra.mxu0 %v551
    %717 = vmatprep.subr.mxu0 0.0
    %718 = vmatpush1.msra.mxu0 %v552
    %719 = vmatprep.subr.mxu0 0.0
    %720 = vmatpush1.msra.mxu0 %v553
    %721 = vmatprep.subr.mxu0 0.0
    %722 = vmatpush1.msra.mxu0 %v554
    %723 = vmatprep.subr.mxu0 0.0
    %724 = vmatpush1.msra.mxu0 %v555
    %725 = vmatprep.subr.mxu0 0.0
    %726 = vmatpush1.msra.mxu0 %v556
    %727 = vmatprep.subr.mxu0 0.0
    %728 = vmatpush1.msra.mxu0 %v557
    %729 = vmatprep.subr.mxu0 0.0
    %730 = vmatpush1.msra.mxu0 %v558
    %731 = vmatprep.subr.mxu0 0.0
    %732 = vmatpush1.msra.mxu0 %v559
    %733 = vmatprep.subr.mxu0 0.0
    %734 = vmatpush1.msra.mxu0 %v560
    %735 = vmatprep.subr.mxu0 0.0
    %736 = vmatpush1.msra.mxu0 %v561
    %737 = vmatprep.subr.mxu0 0.0
    %738 = vmatpush1.msra.mxu0 %v562
    %739 = vmatprep.subr.mxu0 0.0
    %740 = vmatpush1.msra.mxu0 %v563
    %741 = vmatprep.subr.mxu0 0.0
    %742 = vmatpush1.msra.mxu0 %v564
    %743 = vmatprep.subr.mxu0 0.0
    %744 = vmatpush1.msra.mxu0 %v565
    %745 = vmatprep.subr.mxu0 0.0
    %746 = vmatpush1.msra.mxu0 0.0
    %747 = vmatprep.subr.mxu0 0.0
    %748 = vmatpush1.msra.mxu0 0.0
    %749 = vmatprep.subr.mxu0 0.0
    %750 = vmatpush1.msra.mxu0 0.0
    %751 = vmatprep.subr.mxu0 0.0
    %752 = vmatpush1.msra.mxu0 0.0
    %753 = vmatprep.subr.mxu0 0.0
    %754 = vmatpush1.msra.mxu0 0.0
    %755 = vmatprep.subr.mxu0 0.0
    %756 = vmatpush1.msra.mxu0 0.0
    %757 = vmatprep.subr.mxu0 0.0
    %758 = vmatpush1.msra.mxu0 0.0
    %759 = vmatprep.subr.mxu0 0.0
    %760 = vmatpush1.msra.mxu0 0.0
    %761 = vmatprep.subr.mxu0 0.0
    %762 = vmatpush1.msra.mxu0 0.0
    %763 = vmatprep.subr.mxu0 0.0
    %764 = vmatpush1.msra.mxu0 0.0
    %765 = vmatprep.subr.mxu0 0.0
    %766 = vmatpush1.msra.mxu0 0.0
    %767 = vmatprep.subr.mxu0 0.0
    %768 = vmatpush1.msra.mxu0 0.0
    %769 = vmatprep.subr.mxu0 0.0
    %770 = vmatpush1.msra.mxu0 0.0
    %771 = vmatprep.subr.mxu0 0.0
    %772 = vmatpush1.msra.mxu0 0.0
    %773 = vmatprep.subr.mxu0 0.0
    %774 = vmatpush1.msra.mxu0 0.0
    %775 = vmatprep.subr.mxu0 0.0
    %776 = vmatpush1.msra.mxu0 0.0
    %777 = vmatprep.mubr.f32.mxu0 0.0
    %778 = vmatmul.mubr.f32.gmra.mrb[0].mxu0 %v485
    %v779 = vpop.f32.mrb[0].mxu0
    %v780 = vadd.f32 %v710, %v779
    %v781 = vpop.f32.mrb[0].mxu0
    %782 = vdwg.mxu0
    %783 = vst [vmem:[%s7] sm:$0xff] %v780
    // Predicated region
    $region42: #{pnet_forward.1} parent=1 // pred_check
      _
    $region43: #{pnet_forward.1} parent=1 // pred_check_branch
      %785 = sbr.rel (0) target = $region45
    $region44: #{pnet_forward.1} parent=1 // pred_region
      _
    $region45: #{pnet_forward.1} parent=1 // pred_fallthru
      _
    // Predicated region
    $region46: #{pnet_forward.1} parent=1 // pred_check
      _
    $region47: #{pnet_forward.1} parent=1 // pred_check_branch
      %787 = sbr.rel (0) target = $region49
    $region48: #{pnet_forward.1} parent=1 // pred_region
      _
    $region49: #{pnet_forward.1} parent=1 // pred_fallthru
      _
    %788 = vsyncpa [#allocation3], 1
    %789 = vsyncpa [#allocation5], 1

</llo_original>
